<compile_context>
chip_gen: v6e
topology: v6e:2x2x1
jax: 0.10.0
libtpu: 0.0.40
codegen_flags: <defaults>
</compile_context>

<pallas_src>
import jax
import jax.numpy as jnp
from jax.experimental import pallas as pl
from jax.experimental.pallas import tpu as pltpu


def _perceptron_kernel(params_ref, x_ref, o_ref):
    # params_ref: (3,) f32 in SMEM -> [w1, w2, b]
    w1 = params_ref[0]
    w2 = params_ref[1]
    b = params_ref[2]
    # x_ref: (2, tm, tn) VMEM tile; both feature planes come in on one DMA stream.
    t = w1 * x_ref[0] + w2 * x_ref[1] + b
    # Same formula as the PyTorch module: 1 / (1 + exp(+t)) == sigmoid(-t).
    # approx reciprocal runs on the EUP slot and co-issues with the VALU fma chain.
    o_ref[...] = pl.reciprocal(1.0 + jnp.exp(t), approx=True)


def perceptron_forward(x, params, *, tm=512, tn=1024):
    """x: (2, R, C) float32; params: (3,) float32 = [w1, w2, b] (built outside the hot path)."""
    f, R, C = x.shape
    assert f == 2
    tm = min(tm, R)
    tn = min(tn, C)
    assert R % tm == 0 and C % tn == 0, "tile must evenly divide the input"
    # (8, 128) layout constraint on the block's trailing dims.
    assert (tm % 8 == 0) or (tm == R)
    assert (tn % 128 == 0) or (tn == C)

    grid = (R // tm, C // tn)
    return pl.pallas_call(
        _perceptron_kernel,
        out_shape=jax.ShapeDtypeStruct((R, C), jnp.float32),
        grid=grid,
        in_specs=[
            pl.BlockSpec(memory_space=pltpu.SMEM),              # params [w1, w2, b], whole array
            pl.BlockSpec((2, tm, tn), lambda i, j: (0, i, j)),  # both planes, one VMEM stream
        ],
        out_specs=pl.BlockSpec((tm, tn), lambda i, j: (i, j)),
        compiler_params=pltpu.CompilerParams(
            # Both axes independent -> shard across v7x's 2 TCs; no-op on v5e/v6e.
            dimension_semantics=("parallel", "parallel"),
            # Tiles sized so 2 streams x 2 pipeline buffers stay well under v7x's 64 MiB VMEM.
            vmem_limit_bytes=48 * 1024 * 1024,
        ),
    )(params, x)


if __name__ == "__main__":
    key = jax.random.PRNGKey(0)
    kx, kp = jax.random.split(key)

    # Small but tile-able input: two feature planes of shape (256, 512).
    R, C = 256, 512
    x = jax.random.normal(kx, (2, R, C), dtype=jnp.float32)

    # Deterministic non-zero parameters. (The module inits them to 0.0, which would make
    # the output a constant 0.5; non-zero values exercise the identical forward math.)
    w1, w2, b = jax.random.normal(kp, (3,), dtype=jnp.float32)
    params = jnp.stack([w1, w2, b]).astype(jnp.float32)  # built once, outside the hot path

    # tm=128 -> grid (2, 1): exercises the tiled/parallel path even at this small size.
    z = perceptron_forward(x, params, tm=128, tn=512)
    z = jax.block_until_ready(z)

    # Pure-JAX reference of the exact PyTorch math.
    t_ref = w1 * x[0] + w2 * x[1] + b
    z_ref = 1.0 / (1.0 + jnp.exp(t_ref))

    assert z.shape == (R, C)
    # Tolerance covers the EUP approx-reciprocal (sigmoid outputs are bounded by 1).
    assert jnp.allclose(z, z_ref, atol=2e-3, rtol=2e-3), float(jnp.max(jnp.abs(z - z_ref)))
    print("KERNEL_OK")
</pallas_src>

<mosaic_0001>
module attributes {stable_mosaic.version = 11 : i64} {
  func.func @_perceptron_kernel(%arg0: i32, %arg1: i32, %arg2: memref<3xf32, #tpu.memory_space<smem>>, %arg3: memref<2x128x512xf32, #tpu.memory_space<vmem>>, %arg4: memref<128x512xf32, #tpu.memory_space<vmem>>) attributes {dimension_semantics = [#tpu.dimension_semantics<parallel>, #tpu.dimension_semantics<parallel>], iteration_bounds = array<i64: 2, 1>, scalar_prefetch = 0 : i64, scratch_operands = 0 : i64, tpu.core_type = #tpu.core_type<tc>, window_params = [{transform_indices = @transform_0, window_bounds = array<i64: 3>}, {transform_indices = @transform_1, window_bounds = array<i64: 2, 128, 512>}, {transform_indices = @transform_2, window_bounds = array<i64: 128, 512>}]} {
    %c0 = arith.constant 0 : index
    %0 = memref.load %arg2[%c0] : memref<3xf32, #tpu.memory_space<smem>>
    %c1 = arith.constant 1 : index
    %1 = memref.load %arg2[%c1] : memref<3xf32, #tpu.memory_space<smem>>
    %c2 = arith.constant 2 : index
    %2 = memref.load %arg2[%c2] : memref<3xf32, #tpu.memory_space<smem>>
    %c0_0 = arith.constant 0 : index
    %c0_1 = arith.constant 0 : index
    %c0_2 = arith.constant 0 : index
    %3 = vector.load %arg3[%c0_0, %c0_1, %c0_2] : memref<2x128x512xf32, #tpu.memory_space<vmem>>, vector<1x128x512xf32>
    %4 = vector.shape_cast %3 : vector<1x128x512xf32> to vector<128x512xf32>
    %5 = vector.broadcast %0 : f32 to vector<128x512xf32>
    %6 = arith.mulf %5, %4 : vector<128x512xf32>
    %c1_3 = arith.constant 1 : index
    %c0_4 = arith.constant 0 : index
    %c0_5 = arith.constant 0 : index
    %7 = vector.load %arg3[%c1_3, %c0_4, %c0_5] : memref<2x128x512xf32, #tpu.memory_space<vmem>>, vector<1x128x512xf32>
    %8 = vector.shape_cast %7 : vector<1x128x512xf32> to vector<128x512xf32>
    %9 = vector.broadcast %1 : f32 to vector<128x512xf32>
    %10 = arith.mulf %9, %8 : vector<128x512xf32>
    %11 = arith.addf %6, %10 : vector<128x512xf32>
    %12 = vector.broadcast %2 : f32 to vector<128x512xf32>
    %13 = arith.addf %11, %12 : vector<128x512xf32>
    %14 = math.exp %13 : vector<128x512xf32>
    %cst = arith.constant 1.000000e+00 : f32
    %15 = vector.broadcast %cst : f32 to vector<128x512xf32>
    %16 = arith.addf %15, %14 : vector<128x512xf32>
    %17 = tpu.reciprocal %16 {approx = true} : vector<128x512xf32> -> vector<128x512xf32>
    %c0_6 = arith.constant 0 : index
    %c0_7 = arith.constant 0 : index
    %18 = vector.load %arg4[%c0_6, %c0_7] : memref<128x512xf32, #tpu.memory_space<vmem>>, vector<128x512xf32>
    tpu.vector_store %arg4[%c0_6, %c0_7], %17 {strides = array<i32>} : memref<128x512xf32, #tpu.memory_space<vmem>>, vector<128x512xf32>,
    return
  }
  func.func @transform_0(%arg0: i32, %arg1: i32) -> i32 {
    %c0_i32 = arith.constant 0 : i32
    %c0_i32_0 = arith.constant 0 : i32
    return %c0_i32 : i32
  }
  func.func @transform_1(%arg0: i32, %arg1: i32) -> (i32, i32, i32) {
    %c0_i32 = arith.constant 0 : i32
    %c0_i32_0 = arith.constant 0 : i32
    return %c0_i32, %arg0, %arg1 : i32, i32, i32
  }
  func.func @transform_2(%arg0: i32, %arg1: i32) -> (i32, i32) {
    %c0_i32 = arith.constant 0 : i32
    return %arg0, %arg1 : i32, i32
  }
}

</mosaic_0001>

<llo_original>
// kernel: tpu_custom_call.1
$region0: #{tpu_custom_call.1}
  #allocation0 [shape = 'u32[]', space=smem, size = 0x4, offset = 0x4, fixed_abs, tag = 'smem constant byte address 0x4 - core index']
  #allocation1 [shape = 'u32[144,128]{1,0:T(1,128)}', space=vmem, size = 0x12000, scoped, tag = 'internal scratch']
  #allocation8 [shape = 's32[]', space=sflag, size = 0x4, offset = 0, fixed_abs, tag = 'sflag constant byte address 0x0 - dummy sync flag']
  %s0 = inlined_call_operand.hbm [shape: f32[3], index: 0, kind: input, shape index: {}]
  %s1 = inlined_call_operand.hbm [shape: f32[2,256,512], index: 1, kind: input, shape index: {}]
  %s2 = inlined_call_operand.hbm [shape: f32[256,512], index: 2, kind: output, shape index: {}]
  %s3 = sld [smem:[#allocation0]]
  $region49: #{tpu_custom_call.1} parent=0
    _
  %s5 = ssub.s32 1, %s3
  %s6 = scalar_select 0, %s5, %s3
  $region1: #{tpu_custom_call.1} parent=0
    #allocation2 [shape = 'u8[512]{0}', space=smem, size = 0x200, scoped, tag = 'input window, operand 0, single buffered']
    #allocation3 [shape = 's32[2]{0}', space=sflag, size = 0x8, scoped, tag = 'scoped memory for tpu_custom_call.1']
    #allocation4 [shape = 's32[2]{0}', space=sflag, size = 0x8, scoped, tag = 'scoped memory for tpu_custom_call.1']
    #allocation5 [shape = 's32[2]{0}', space=sflag, size = 0x8, scoped, tag = 'scoped memory for tpu_custom_call.1']
    #allocation6 [shape = 'u8[1048576]{0}', space=vmem, size = 0x100000, scoped, tag = 'input window, operand 1']
    #allocation7 [shape = 'u8[524288]{0}', space=vmem, size = 0x80000, scoped, tag = 'output window, operand 0']
    %7 = vsyncpa [#allocation5], 0
    %8 = vsyncpa [#allocation3], 0
    %s9 = scalar_lea.sflag [#allocation3], 1
    %10 = vsyncpa %s9, 0
    %11 = vsyncpa [#allocation4], 0
    %s12 = scalar_lea.sflag [#allocation4], 1
    %13 = vsyncpa %s12, 0
    loop: start=0, step=1, limit=4
    $region2: #{tpu_custom_call.1} parent=1 // loop_pre_header
      _
    $region3: #{tpu_custom_call.1} parent=1 // loop_header
      %s15 = sphi 0, %s19
      %p16 = scmp.ge.s32.totalorder %s15, 4
      %s22 = sphi 0, %s34
      %s23 = sphi 0, %s30
      %s24 = sphi 0, %s22
      %s25 = sphi 0, %s23
      %s26 = sphi 0, %s24
      %s27 = sphi 0, %s25
      %s35 = sphi 0, %s35
      %s37 = sphi 0, %s35
      %s38 = sphi 0, %s37
      %s52 = sphi 0, %s38
      %s60 = sphi 0, %s62
      %s63 = sphi 0, %s60
      %s64 = sphi 0, %s63
      %s80 = sphi 0, %s64
      %s88 = sphi 0, %s90
      %s91 = sphi 0, %s88
      %s92 = sphi 0, %s91
      %s108 = sphi 0, %s92
    $region4: #{tpu_custom_call.1} parent=1 // loop_header_branch
      %18 = sbr.rel (%p16) target = $region8
    $region5: #{tpu_custom_call.1} parent=1 // loop_body
      %s20 = ssub.s32 %s15, 1
      %s21 = ssub.s32 %s15, 2
      %s28 = sadd.s32 1, %s23
      %p29 = scmp.ge.s32.totalorder %s28, 1
      %s30 = scalar_select %p29, 0, %s28
      %s31 = sadd.s32 1, %s22
      %s32 = scalar_select %p29, %s31, %s22
      %p33 = scmp.ge.s32.totalorder %s32, 2
      %s34 = scalar_select %p33, 0, %s32
      %s36 = sadd.s32 %s35, 1
      %p39 = scmp.eq.s32.totalorder %s15, 1
      %p40 = scmp.ne.s32.totalorder %s35, %s37
      %p41 = scmp.eq.s32.totalorder %s15, 0
      %p42 = por %p40, %p41
      %p43 = scmp.ne.s32.totalorder %s35, %s37
      %p44 = scmp.eq.s32.totalorder %s20, 1
      %p45 = por %p43, %p44
      %p46 = scmp.ne.s32.totalorder %s37, %s38
      %p47 = scmp.eq.s32.totalorder %s20, 0
      %p48 = por %p46, %p47
      %p49 = scmp.ne.s32.totalorder %s37, %s38
      %p50 = scmp.eq.s32.totalorder %s21, 1
      %p51 = por %p49, %p50
      %p53 = scmp.ne.s32.totalorder %s38, %s52
      %p54 = scmp.eq.s32.totalorder %s21, 0
      %p55 = por %p53, %p54
      %s56 = ssub.s32 %s22, %s34
      %s57 = ssub.s32 %s23, %s30
      %s58 = sor.u32 %s56, %s57
      %p59 = scmp.eq.s32.totalorder %s58, 0
      %s61 = sadd.s32 %s60, 1
      %s62 = scalar_select %p59, %s60, %s61
      %p65 = pneg %p59
      %p66 = scmp.eq.s32.totalorder %s15, 1
      %p67 = por %p65, %p66
      %p68 = scmp.ne.s32.totalorder %s60, %s63
      %p69 = scmp.eq.s32.totalorder %s15, 0
      %p70 = por %p68, %p69
      %p71 = scmp.ne.s32.totalorder %s60, %s63
      %p72 = scmp.eq.s32.totalorder %s20, 1
      %p73 = por %p71, %p72
      %p74 = scmp.ne.s32.totalorder %s63, %s64
      %p75 = scmp.eq.s32.totalorder %s20, 0
      %p76 = por %p74, %p75
      %p77 = scmp.ne.s32.totalorder %s63, %s64
      %p78 = scmp.eq.s32.totalorder %s21, 1
      %p79 = por %p77, %p78
      %p81 = scmp.ne.s32.totalorder %s64, %s80
      %p82 = scmp.eq.s32.totalorder %s21, 0
      %p83 = por %p81, %p82
      %s84 = ssub.s32 %s22, %s34
      %s85 = ssub.s32 %s23, %s30
      %s86 = sor.u32 %s84, %s85
      %p87 = scmp.eq.s32.totalorder %s86, 0
      %s89 = sadd.s32 %s88, 1
      %s90 = scalar_select %p87, %s88, %s89
      %p93 = pneg %p87
      %p94 = scmp.eq.s32.totalorder %s15, 1
      %p95 = por %p93, %p94
      %p96 = scmp.ne.s32.totalorder %s88, %s91
      %p97 = scmp.eq.s32.totalorder %s15, 0
      %p98 = por %p96, %p97
      %p99 = scmp.ne.s32.totalorder %s88, %s91
      %p100 = scmp.eq.s32.totalorder %s20, 1
      %p101 = por %p99, %p100
      %p102 = scmp.ne.s32.totalorder %s91, %s92
      %p103 = scmp.eq.s32.totalorder %s20, 0
      %p104 = por %p102, %p103
      %p105 = scmp.ne.s32.totalorder %s91, %s92
      %p106 = scmp.eq.s32.totalorder %s21, 1
      %p107 = por %p105, %p106
      %p109 = scmp.ne.s32.totalorder %s92, %s108
      %p110 = scmp.eq.s32.totalorder %s21, 0
      %p111 = por %p109, %p110
      %p112 = scmp.le.s32.totalorder 1, %s15
      %p113 = scmp.lt.s32.totalorder %s15, 3
      %p114 = pnand %p112, %p113
      %p115 = pneg %p114
      // Predicated region
      $region9: #{tpu_custom_call.1} parent=5 // pred_check
        _
      $region10: #{tpu_custom_call.1} parent=5 // pred_check_branch
        %117 = sbr.rel (%p114) target = $region12
      $region11: #{tpu_custom_call.1} parent=5 // pred_region
        %s118 = ssub.s32 %s15, 1
        // Predicated region
        $region13: #{tpu_custom_call.1} parent=11 // pred_check
          %p119 = pneg %p48
        $region14: #{tpu_custom_call.1} parent=11 // pred_check_branch
          %121 = sbr.rel (%p119) target = $region16
        $region15: #{tpu_custom_call.1} parent=11 // pred_region
          %s123 = ssub.s32 16, 16
          %124 = vsyncadd [#allocation5], %s123
          %127 = dma.hbm_to_smem %s0, 16, [#allocation2], [#allocation5]
        $region16: #{tpu_custom_call.1} parent=11 // pred_fallthru
          _
      $region12: #{tpu_custom_call.1} parent=5 // pred_fallthru
        _
      %p128 = scmp.lt.s32.totalorder %s15, 2
      // Predicated region
      $region17: #{tpu_custom_call.1} parent=5 // pred_check
        %p129 = pneg %p128
      $region18: #{tpu_custom_call.1} parent=5 // pred_check_branch
        %131 = sbr.rel (%p129) target = $region20
      $region19: #{tpu_custom_call.1} parent=5 // pred_region
        // Predicated region
        $region21: #{tpu_custom_call.1} parent=19 // pred_check
          %p132 = pneg %p70
        $region22: #{tpu_custom_call.1} parent=19 // pred_check_branch
          %134 = sbr.rel (%p132) target = $region24
        $region23: #{tpu_custom_call.1} parent=19 // pred_region
          #allocation9 [shape = 'u32[6]{0}', space=smem, size = 0x18, scoped, tag = 'DMA stride descriptor']
          %s135 = sand.u32 %s60, 1
          %s136 = scalar_lea.sflag [#allocation3], %s135
          %s137 = sand.u32 %s60, 1
          %s138 = smul.addr %s137, 1024
          %s139 = scalar_lea.vmem [#allocation6], %s138
          %s140 = smul.u32 16, %s22
          %s141 = smul.u32 4, %s23
          %s143 = ssub.s32 16384, 16384
          %144 = vsyncadd %s136, %s143
          %s145 = smul.addr %s140, 4
          %s146 = sadd.s32 %s141, %s145
          %s147 = smul.addr %s146, 128
          %s148 = scalar_lea.hbm %s1, %s147
          %s150 = sshll.u32 1, 14
          %s151 = sxor.u32 4294967295, %s150
          %s153 = sld [smem:[#allocation0]]
          %s154 = sadd.s32 2, %s153
          %s156 = sshll.u32 7, 26
          %s157 = sxor.u32 4294967295, %s156
          %s158 = sand.u32 0, %s157
          %s159 = sshll.u32 %s154, 26
          %s160 = sor.u32 %s158, %s159
          %s161 = sshll.u32 %s139, 4
          %s162 = int_to_ptr.vmem [resolvable:$true] %s161
          %168 = sst [smem:[#allocation9]] 16384
          %s169 = scalar_lea.smem [#allocation9], 1
          %170 = sst [smem:[%s169]] 8192
          %s171 = scalar_lea.smem [#allocation9], 2
          %172 = sst [smem:[%s171]] 16
          %s173 = scalar_lea.smem [#allocation9], 3
          %174 = sst [smem:[%s173]] 512
          %s175 = scalar_lea.smem [#allocation9], 4
          %176 = sst [smem:[%s175]] 512
          %s177 = scalar_lea.smem [#allocation9], 5
          %178 = sst [smem:[%s177]] 32
          %180 = dma.general %s148, 16384, %s162, %s136, 131072, [#allocation9], %s160, 0
        $region24: #{tpu_custom_call.1} parent=19 // pred_fallthru
          _
      $region20: #{tpu_custom_call.1} parent=5 // pred_fallthru
        _
      %p181 = scmp.le.s32.totalorder 1, %s15
      %p182 = scmp.lt.s32.totalorder %s15, 3
      %p183 = pnand %p181, %p182
      %p184 = pneg %p183
      // Predicated region
      $region25: #{tpu_custom_call.1} parent=5 // pred_check
        _
      $region26: #{tpu_custom_call.1} parent=5 // pred_check_branch
        %186 = sbr.rel (%p183) target = $region28
      $region27: #{tpu_custom_call.1} parent=5 // pred_region
        %s187 = ssub.s32 %s15, 1
        // Predicated region
        $region29: #{tpu_custom_call.1} parent=27 // pred_check
          %p188 = pneg %p48
        $region30: #{tpu_custom_call.1} parent=27 // pred_check_branch
          %190 = sbr.rel (%p188) target = $region32
        $region31: #{tpu_custom_call.1} parent=27 // pred_region
          %191 = dma.done [#allocation5], 16
        $region32: #{tpu_custom_call.1} parent=27 // pred_fallthru
          _
        %s192 = sand.u32 %s63, 1
        %s193 = scalar_lea.sflag [#allocation3], %s192
        %s194 = sand.u32 %s63, 1
        %s195 = smul.addr %s194, 1024
        %s196 = scalar_lea.vmem [#allocation6], %s195
        // Predicated region
        $region33: #{tpu_custom_call.1} parent=27 // pred_check
          %p197 = pneg %p76
        $region34: #{tpu_custom_call.1} parent=27 // pred_check_branch
          %199 = sbr.rel (%p197) target = $region36
        $region35: #{tpu_custom_call.1} parent=27 // pred_region
          %200 = dma.done %s193, 16384
        $region36: #{tpu_custom_call.1} parent=27 // pred_fallthru
          _
        %201 = sfence
        %p202 = pneg %p48
        %p203 = pneg %p45
        %s204 = sand.u32 %s63, 1
        %s205 = scalar_lea.sflag [#allocation3], %s204
        %s206 = sand.u32 %s63, 1
        %s207 = smul.addr %s206, 1024
        %s208 = scalar_lea.vmem [#allocation6], %s207
        %p209 = pneg %p76
        %p210 = pneg %p73
        %p211 = pneg %p104
        %p212 = pneg %p101
        %s213 = sand.u32 %s91, 1
        %s214 = scalar_lea.sflag [#allocation4], %s213
        %s215 = sand.u32 %s91, 1
        %s216 = smul.addr %s215, 512
        %s217 = scalar_lea.vmem [#allocation7], %s216
        %s218 = smul.u32 16, %s24
        %s219 = smul.u32 4, %s25
        %s220 = smul.u32 16, %s24
        %s221 = smul.u32 4, %s25
        %s222 = sld [smem:[#allocation2]]
        %s223 = sld [smem:[#allocation2 + $0x1]]
        %s224 = sld [smem:[#allocation2 + $0x2]]
        %v225 = vld [vmem:[%s196] sm:$0xff]
        %v226 = vld [vmem:[%s196 + $0x8] sm:$0xff]
        %v227 = vld [vmem:[%s196 + $0x10] sm:$0xff]
        %v228 = vld [vmem:[%s196 + $0x18] sm:$0xff]
        %v229 = vld [vmem:[%s196 + $0x20] sm:$0xff]
        %v230 = vld [vmem:[%s196 + $0x28] sm:$0xff]
        %v231 = vld [vmem:[%s196 + $0x30] sm:$0xff]
        %v232 = vld [vmem:[%s196 + $0x38] sm:$0xff]
        %v233 = vld [vmem:[%s196 + $0x40] sm:$0xff]
        %v234 = vld [vmem:[%s196 + $0x48] sm:$0xff]
        %v235 = vld [vmem:[%s196 + $0x50] sm:$0xff]
        %v236 = vld [vmem:[%s196 + $0x58] sm:$0xff]
        %v237 = vld [vmem:[%s196 + $0x60] sm:$0xff]
        %v238 = vld [vmem:[%s196 + $0x68] sm:$0xff]
        %v239 = vld [vmem:[%s196 + $0x70] sm:$0xff]
        %v240 = vld [vmem:[%s196 + $0x78] sm:$0xff]
        %v241 = vld [vmem:[%s196 + $0x80] sm:$0xff]
        %v242 = vld [vmem:[%s196 + $0x88] sm:$0xff]
        %v243 = vld [vmem:[%s196 + $0x90] sm:$0xff]
        %v244 = vld [vmem:[%s196 + $0x98] sm:$0xff]
        %v245 = vld [vmem:[%s196 + $0xa0] sm:$0xff]
        %v246 = vld [vmem:[%s196 + $0xa8] sm:$0xff]
        %v247 = vld [vmem:[%s196 + $0xb0] sm:$0xff]
        %v248 = vld [vmem:[%s196 + $0xb8] sm:$0xff]
        %v249 = vld [vmem:[%s196 + $0xc0] sm:$0xff]
        %v250 = vld [vmem:[%s196 + $0xc8] sm:$0xff]
        %v251 = vld [vmem:[%s196 + $0xd0] sm:$0xff]
        %v252 = vld [vmem:[%s196 + $0xd8] sm:$0xff]
        %v253 = vld [vmem:[%s196 + $0xe0] sm:$0xff]
        %v254 = vld [vmem:[%s196 + $0xe8] sm:$0xff]
        %v255 = vld [vmem:[%s196 + $0xf0] sm:$0xff]
        %v256 = vld [vmem:[%s196 + $0xf8] sm:$0xff]
        %v257 = vld [vmem:[%s196 + $0x100] sm:$0xff]
        %v258 = vld [vmem:[%s196 + $0x108] sm:$0xff]
        %v259 = vld [vmem:[%s196 + $0x110] sm:$0xff]
        %v260 = vld [vmem:[%s196 + $0x118] sm:$0xff]
        %v261 = vld [vmem:[%s196 + $0x120] sm:$0xff]
        %v262 = vld [vmem:[%s196 + $0x128] sm:$0xff]
        %v263 = vld [vmem:[%s196 + $0x130] sm:$0xff]
        %v264 = vld [vmem:[%s196 + $0x138] sm:$0xff]
        %v265 = vld [vmem:[%s196 + $0x140] sm:$0xff]
        %v266 = vld [vmem:[%s196 + $0x148] sm:$0xff]
        %v267 = vld [vmem:[%s196 + $0x150] sm:$0xff]
        %v268 = vld [vmem:[%s196 + $0x158] sm:$0xff]
        %v269 = vld [vmem:[%s196 + $0x160] sm:$0xff]
        %v270 = vld [vmem:[%s196 + $0x168] sm:$0xff]
        %v271 = vld [vmem:[%s196 + $0x170] sm:$0xff]
        %v272 = vld [vmem:[%s196 + $0x178] sm:$0xff]
        %v273 = vld [vmem:[%s196 + $0x180] sm:$0xff]
        %v274 = vld [vmem:[%s196 + $0x188] sm:$0xff]
        %v275 = vld [vmem:[%s196 + $0x190] sm:$0xff]
        %v276 = vld [vmem:[%s196 + $0x198] sm:$0xff]
        %v277 = vld [vmem:[%s196 + $0x1a0] sm:$0xff]
        %v278 = vld [vmem:[%s196 + $0x1a8] sm:$0xff]
        %v279 = vld [vmem:[%s196 + $0x1b0] sm:$0xff]
        %v280 = vld [vmem:[%s196 + $0x1b8] sm:$0xff]
        %v281 = vld [vmem:[%s196 + $0x1c0] sm:$0xff]
        %v282 = vld [vmem:[%s196 + $0x1c8] sm:$0xff]
        %v283 = vld [vmem:[%s196 + $0x1d0] sm:$0xff]
        %v284 = vld [vmem:[%s196 + $0x1d8] sm:$0xff]
        %v285 = vld [vmem:[%s196 + $0x1e0] sm:$0xff]
        %v286 = vld [vmem:[%s196 + $0x1e8] sm:$0xff]
        %v287 = vld [vmem:[%s196 + $0x1f0] sm:$0xff]
        %v288 = vld [vmem:[%s196 + $0x1f8] sm:$0xff]
        %v289 = vstv %s222
        %v290 = vmul.f32 %v289, %v225
        %v291 = vmul.f32 %v289, %v226
        %v292 = vmul.f32 %v289, %v227
        %v293 = vmul.f32 %v289, %v228
        %v294 = vmul.f32 %v289, %v229
        %v295 = vmul.f32 %v289, %v230
        %v296 = vmul.f32 %v289, %v231
        %v297 = vmul.f32 %v289, %v232
        %v298 = vmul.f32 %v289, %v233
        %v299 = vmul.f32 %v289, %v234
        %v300 = vmul.f32 %v289, %v235
        %v301 = vmul.f32 %v289, %v236
        %v302 = vmul.f32 %v289, %v237
        %v303 = vmul.f32 %v289, %v238
        %v304 = vmul.f32 %v289, %v239
        %v305 = vmul.f32 %v289, %v240
        %v306 = vmul.f32 %v289, %v241
        %v307 = vmul.f32 %v289, %v242
        %v308 = vmul.f32 %v289, %v243
        %v309 = vmul.f32 %v289, %v244
        %v310 = vmul.f32 %v289, %v245
        %v311 = vmul.f32 %v289, %v246
        %v312 = vmul.f32 %v289, %v247
        %v313 = vmul.f32 %v289, %v248
        %v314 = vmul.f32 %v289, %v249
        %v315 = vmul.f32 %v289, %v250
        %v316 = vmul.f32 %v289, %v251
        %v317 = vmul.f32 %v289, %v252
        %v318 = vmul.f32 %v289, %v253
        %v319 = vmul.f32 %v289, %v254
        %v320 = vmul.f32 %v289, %v255
        %v321 = vmul.f32 %v289, %v256
        %v322 = vmul.f32 %v289, %v257
        %v323 = vmul.f32 %v289, %v258
        %v324 = vmul.f32 %v289, %v259
        %v325 = vmul.f32 %v289, %v260
        %v326 = vmul.f32 %v289, %v261
        %v327 = vmul.f32 %v289, %v262
        %v328 = vmul.f32 %v289, %v263
        %v329 = vmul.f32 %v289, %v264
        %v330 = vmul.f32 %v289, %v265
        %v331 = vmul.f32 %v289, %v266
        %v332 = vmul.f32 %v289, %v267
        %v333 = vmul.f32 %v289, %v268
        %v334 = vmul.f32 %v289, %v269
        %v335 = vmul.f32 %v289, %v270
        %v336 = vmul.f32 %v289, %v271
        %v337 = vmul.f32 %v289, %v272
        %v338 = vmul.f32 %v289, %v273
        %v339 = vmul.f32 %v289, %v274
        %v340 = vmul.f32 %v289, %v275
        %v341 = vmul.f32 %v289, %v276
        %v342 = vmul.f32 %v289, %v277
        %v343 = vmul.f32 %v289, %v278
        %v344 = vmul.f32 %v289, %v279
        %v345 = vmul.f32 %v289, %v280
        %v346 = vmul.f32 %v289, %v281
        %v347 = vmul.f32 %v289, %v282
        %v348 = vmul.f32 %v289, %v283
        %v349 = vmul.f32 %v289, %v284
        %v350 = vmul.f32 %v289, %v285
        %v351 = vmul.f32 %v289, %v286
        %v352 = vmul.f32 %v289, %v287
        %v353 = vmul.f32 %v289, %v288
        %s354 = scalar_lea.vmem %s196, 512 [#allocation6]
        %v355 = vld [vmem:[%s354] sm:$0xff]
        %v356 = vld [vmem:[%s354 + $0x8] sm:$0xff]
        %v357 = vld [vmem:[%s354 + $0x10] sm:$0xff]
        %v358 = vld [vmem:[%s354 + $0x18] sm:$0xff]
        %v359 = vld [vmem:[%s354 + $0x20] sm:$0xff]
        %v360 = vld [vmem:[%s354 + $0x28] sm:$0xff]
        %v361 = vld [vmem:[%s354 + $0x30] sm:$0xff]
        %v362 = vld [vmem:[%s354 + $0x38] sm:$0xff]
        %v363 = vld [vmem:[%s354 + $0x40] sm:$0xff]
        %v364 = vld [vmem:[%s354 + $0x48] sm:$0xff]
        %v365 = vld [vmem:[%s354 + $0x50] sm:$0xff]
        %v366 = vld [vmem:[%s354 + $0x58] sm:$0xff]
        %v367 = vld [vmem:[%s354 + $0x60] sm:$0xff]
        %v368 = vld [vmem:[%s354 + $0x68] sm:$0xff]
        %v369 = vld [vmem:[%s354 + $0x70] sm:$0xff]
        %v370 = vld [vmem:[%s354 + $0x78] sm:$0xff]
        %v371 = vld [vmem:[%s354 + $0x80] sm:$0xff]
        %v372 = vld [vmem:[%s354 + $0x88] sm:$0xff]
        %v373 = vld [vmem:[%s354 + $0x90] sm:$0xff]
        %v374 = vld [vmem:[%s354 + $0x98] sm:$0xff]
        %v375 = vld [vmem:[%s354 + $0xa0] sm:$0xff]
        %v376 = vld [vmem:[%s354 + $0xa8] sm:$0xff]
        %v377 = vld [vmem:[%s354 + $0xb0] sm:$0xff]
        %v378 = vld [vmem:[%s354 + $0xb8] sm:$0xff]
        %v379 = vld [vmem:[%s354 + $0xc0] sm:$0xff]
        %v380 = vld [vmem:[%s354 + $0xc8] sm:$0xff]
        %v381 = vld [vmem:[%s354 + $0xd0] sm:$0xff]
        %v382 = vld [vmem:[%s354 + $0xd8] sm:$0xff]
        %v383 = vld [vmem:[%s354 + $0xe0] sm:$0xff]
        %v384 = vld [vmem:[%s354 + $0xe8] sm:$0xff]
        %v385 = vld [vmem:[%s354 + $0xf0] sm:$0xff]
        %v386 = vld [vmem:[%s354 + $0xf8] sm:$0xff]
        %v387 = vld [vmem:[%s354 + $0x100] sm:$0xff]
        %v388 = vld [vmem:[%s354 + $0x108] sm:$0xff]
        %v389 = vld [vmem:[%s354 + $0x110] sm:$0xff]
        %v390 = vld [vmem:[%s354 + $0x118] sm:$0xff]
        %v391 = vld [vmem:[%s354 + $0x120] sm:$0xff]
        %v392 = vld [vmem:[%s354 + $0x128] sm:$0xff]
        %v393 = vld [vmem:[%s354 + $0x130] sm:$0xff]
        %v394 = vld [vmem:[%s354 + $0x138] sm:$0xff]
        %v395 = vld [vmem:[%s354 + $0x140] sm:$0xff]
        %v396 = vld [vmem:[%s354 + $0x148] sm:$0xff]
        %v397 = vld [vmem:[%s354 + $0x150] sm:$0xff]
        %v398 = vld [vmem:[%s354 + $0x158] sm:$0xff]
        %v399 = vld [vmem:[%s354 + $0x160] sm:$0xff]
        %v400 = vld [vmem:[%s354 + $0x168] sm:$0xff]
        %v401 = vld [vmem:[%s354 + $0x170] sm:$0xff]
        %v402 = vld [vmem:[%s354 + $0x178] sm:$0xff]
        %v403 = vld [vmem:[%s354 + $0x180] sm:$0xff]
        %v404 = vld [vmem:[%s354 + $0x188] sm:$0xff]
        %v405 = vld [vmem:[%s354 + $0x190] sm:$0xff]
        %v406 = vld [vmem:[%s354 + $0x198] sm:$0xff]
        %v407 = vld [vmem:[%s354 + $0x1a0] sm:$0xff]
        %v408 = vld [vmem:[%s354 + $0x1a8] sm:$0xff]
        %v409 = vld [vmem:[%s354 + $0x1b0] sm:$0xff]
        %v410 = vld [vmem:[%s354 + $0x1b8] sm:$0xff]
        %v411 = vld [vmem:[%s354 + $0x1c0] sm:$0xff]
        %v412 = vld [vmem:[%s354 + $0x1c8] sm:$0xff]
        %v413 = vld [vmem:[%s354 + $0x1d0] sm:$0xff]
        %v414 = vld [vmem:[%s354 + $0x1d8] sm:$0xff]
        %v415 = vld [vmem:[%s354 + $0x1e0] sm:$0xff]
        %v416 = vld [vmem:[%s354 + $0x1e8] sm:$0xff]
        %v417 = vld [vmem:[%s354 + $0x1f0] sm:$0xff]
        %v418 = vld [vmem:[%s354 + $0x1f8] sm:$0xff]
        %v419 = vstv %s223
        %v420 = vmul.f32 %v419, %v355
        %v421 = vmul.f32 %v419, %v356
        %v422 = vmul.f32 %v419, %v357
        %v423 = vmul.f32 %v419, %v358
        %v424 = vmul.f32 %v419, %v359
        %v425 = vmul.f32 %v419, %v360
        %v426 = vmul.f32 %v419, %v361
        %v427 = vmul.f32 %v419, %v362
        %v428 = vmul.f32 %v419, %v363
        %v429 = vmul.f32 %v419, %v364
        %v430 = vmul.f32 %v419, %v365
        %v431 = vmul.f32 %v419, %v366
        %v432 = vmul.f32 %v419, %v367
        %v433 = vmul.f32 %v419, %v368
        %v434 = vmul.f32 %v419, %v369
        %v435 = vmul.f32 %v419, %v370
        %v436 = vmul.f32 %v419, %v371
        %v437 = vmul.f32 %v419, %v372
        %v438 = vmul.f32 %v419, %v373
        %v439 = vmul.f32 %v419, %v374
        %v440 = vmul.f32 %v419, %v375
        %v441 = vmul.f32 %v419, %v376
        %v442 = vmul.f32 %v419, %v377
        %v443 = vmul.f32 %v419, %v378
        %v444 = vmul.f32 %v419, %v379
        %v445 = vmul.f32 %v419, %v380
        %v446 = vmul.f32 %v419, %v381
        %v447 = vmul.f32 %v419, %v382
        %v448 = vmul.f32 %v419, %v383
        %v449 = vmul.f32 %v419, %v384
        %v450 = vmul.f32 %v419, %v385
        %v451 = vmul.f32 %v419, %v386
        %v452 = vmul.f32 %v419, %v387
        %v453 = vmul.f32 %v419, %v388
        %v454 = vmul.f32 %v419, %v389
        %v455 = vmul.f32 %v419, %v390
        %v456 = vmul.f32 %v419, %v391
        %v457 = vmul.f32 %v419, %v392
        %v458 = vmul.f32 %v419, %v393
        %v459 = vmul.f32 %v419, %v394
        %v460 = vmul.f32 %v419, %v395
        %v461 = vmul.f32 %v419, %v396
        %v462 = vmul.f32 %v419, %v397
        %v463 = vmul.f32 %v419, %v398
        %v464 = vmul.f32 %v419, %v399
        %v465 = vmul.f32 %v419, %v400
        %v466 = vmul.f32 %v419, %v401
        %v467 = vmul.f32 %v419, %v402
        %v468 = vmul.f32 %v419, %v403
        %v469 = vmul.f32 %v419, %v404
        %v470 = vmul.f32 %v419, %v405
        %v471 = vmul.f32 %v419, %v406
        %v472 = vmul.f32 %v419, %v407
        %v473 = vmul.f32 %v419, %v408
        %v474 = vmul.f32 %v419, %v409
        %v475 = vmul.f32 %v419, %v410
        %v476 = vmul.f32 %v419, %v411
        %v477 = vmul.f32 %v419, %v412
        %v478 = vmul.f32 %v419, %v413
        %v479 = vmul.f32 %v419, %v414
        %v480 = vmul.f32 %v419, %v415
        %v481 = vmul.f32 %v419, %v416
        %v482 = vmul.f32 %v419, %v417
        %v483 = vmul.f32 %v419, %v418
        %v484 = vadd.f32 %v290, %v420
        %v485 = vadd.f32 %v291, %v421
        %v486 = vadd.f32 %v292, %v422
        %v487 = vadd.f32 %v293, %v423
        %v488 = vadd.f32 %v294, %v424
        %v489 = vadd.f32 %v295, %v425
        %v490 = vadd.f32 %v296, %v426
        %v491 = vadd.f32 %v297, %v427
        %v492 = vadd.f32 %v298, %v428
        %v493 = vadd.f32 %v299, %v429
        %v494 = vadd.f32 %v300, %v430
        %v495 = vadd.f32 %v301, %v431
        %v496 = vadd.f32 %v302, %v432
        %v497 = vadd.f32 %v303, %v433
        %v498 = vadd.f32 %v304, %v434
        %v499 = vadd.f32 %v305, %v435
        %v500 = vadd.f32 %v306, %v436
        %v501 = vadd.f32 %v307, %v437
        %v502 = vadd.f32 %v308, %v438
        %v503 = vadd.f32 %v309, %v439
        %v504 = vadd.f32 %v310, %v440
        %v505 = vadd.f32 %v311, %v441
        %v506 = vadd.f32 %v312, %v442
        %v507 = vadd.f32 %v313, %v443
        %v508 = vadd.f32 %v314, %v444
        %v509 = vadd.f32 %v315, %v445
        %v510 = vadd.f32 %v316, %v446
        %v511 = vadd.f32 %v317, %v447
        %v512 = vadd.f32 %v318, %v448
        %v513 = vadd.f32 %v319, %v449
        %v514 = vadd.f32 %v320, %v450
        %v515 = vadd.f32 %v321, %v451
        %v516 = vadd.f32 %v322, %v452
        %v517 = vadd.f32 %v323, %v453
        %v518 = vadd.f32 %v324, %v454
        %v519 = vadd.f32 %v325, %v455
        %v520 = vadd.f32 %v326, %v456
        %v521 = vadd.f32 %v327, %v457
        %v522 = vadd.f32 %v328, %v458
        %v523 = vadd.f32 %v329, %v459
        %v524 = vadd.f32 %v330, %v460
        %v525 = vadd.f32 %v331, %v461
        %v526 = vadd.f32 %v332, %v462
        %v527 = vadd.f32 %v333, %v463
        %v528 = vadd.f32 %v334, %v464
        %v529 = vadd.f32 %v335, %v465
        %v530 = vadd.f32 %v336, %v466
        %v531 = vadd.f32 %v337, %v467
        %v532 = vadd.f32 %v338, %v468
        %v533 = vadd.f32 %v339, %v469
        %v534 = vadd.f32 %v340, %v470
        %v535 = vadd.f32 %v341, %v471
        %v536 = vadd.f32 %v342, %v472
        %v537 = vadd.f32 %v343, %v473
        %v538 = vadd.f32 %v344, %v474
        %v539 = vadd.f32 %v345, %v475
        %v540 = vadd.f32 %v346, %v476
        %v541 = vadd.f32 %v347, %v477
        %v542 = vadd.f32 %v348, %v478
        %v543 = vadd.f32 %v349, %v479
        %v544 = vadd.f32 %v350, %v480
        %v545 = vadd.f32 %v351, %v481
        %v546 = vadd.f32 %v352, %v482
        %v547 = vadd.f32 %v353, %v483
        %v548 = vstv %s224
        %v549 = vadd.f32 %v484, %v548
        %v550 = vadd.f32 %v485, %v548
        %v551 = vadd.f32 %v486, %v548
        %v552 = vadd.f32 %v487, %v548
        %v553 = vadd.f32 %v488, %v548
        %v554 = vadd.f32 %v489, %v548
        %v555 = vadd.f32 %v490, %v548
        %v556 = vadd.f32 %v491, %v548
        %v557 = vadd.f32 %v492, %v548
        %v558 = vadd.f32 %v493, %v548
        %v559 = vadd.f32 %v494, %v548
        %v560 = vadd.f32 %v495, %v548
        %v561 = vadd.f32 %v496, %v548
        %v562 = vadd.f32 %v497, %v548
        %v563 = vadd.f32 %v498, %v548
        %v564 = vadd.f32 %v499, %v548
        %v565 = vadd.f32 %v500, %v548
        %v566 = vadd.f32 %v501, %v548
        %v567 = vadd.f32 %v502, %v548
        %v568 = vadd.f32 %v503, %v548
        %v569 = vadd.f32 %v504, %v548
        %v570 = vadd.f32 %v505, %v548
        %v571 = vadd.f32 %v506, %v548
        %v572 = vadd.f32 %v507, %v548
        %v573 = vadd.f32 %v508, %v548
        %v574 = vadd.f32 %v509, %v548
        %v575 = vadd.f32 %v510, %v548
        %v576 = vadd.f32 %v511, %v548
        %v577 = vadd.f32 %v512, %v548
        %v578 = vadd.f32 %v513, %v548
        %v579 = vadd.f32 %v514, %v548
        %v580 = vadd.f32 %v515, %v548
        %v581 = vadd.f32 %v516, %v548
        %v582 = vadd.f32 %v517, %v548
        %v583 = vadd.f32 %v518, %v548
        %v584 = vadd.f32 %v519, %v548
        %v585 = vadd.f32 %v520, %v548
        %v586 = vadd.f32 %v521, %v548
        %v587 = vadd.f32 %v522, %v548
        %v588 = vadd.f32 %v523, %v548
        %v589 = vadd.f32 %v524, %v548
        %v590 = vadd.f32 %v525, %v548
        %v591 = vadd.f32 %v526, %v548
        %v592 = vadd.f32 %v527, %v548
        %v593 = vadd.f32 %v528, %v548
        %v594 = vadd.f32 %v529, %v548
        %v595 = vadd.f32 %v530, %v548
        %v596 = vadd.f32 %v531, %v548
        %v597 = vadd.f32 %v532, %v548
        %v598 = vadd.f32 %v533, %v548
        %v599 = vadd.f32 %v534, %v548
        %v600 = vadd.f32 %v535, %v548
        %v601 = vadd.f32 %v536, %v548
        %v602 = vadd.f32 %v537, %v548
        %v603 = vadd.f32 %v538, %v548
        %v604 = vadd.f32 %v539, %v548
        %v605 = vadd.f32 %v540, %v548
        %v606 = vadd.f32 %v541, %v548
        %v607 = vadd.f32 %v542, %v548
        %v608 = vadd.f32 %v543, %v548
        %v609 = vadd.f32 %v544, %v548
        %v610 = vadd.f32 %v545, %v548
        %v611 = vadd.f32 %v546, %v548
        %v612 = vadd.f32 %v547, %v548
        %v613 = vmul.f32 %v549, 1.442695
        %v614 = vpow.pop %v613
        %v615 = vmul.f32 %v550, 1.442695
        %v616 = vpow.pop %v615
        %v617 = vmul.f32 %v551, 1.442695
        %v618 = vpow.pop %v617
        %v619 = vmul.f32 %v552, 1.442695
        %v620 = vpow.pop %v619
        %v621 = vmul.f32 %v553, 1.442695
        %v622 = vpow.pop %v621
        %v623 = vmul.f32 %v554, 1.442695
        %v624 = vpow.pop %v623
        %v625 = vmul.f32 %v555, 1.442695
        %v626 = vpow.pop %v625
        %v627 = vmul.f32 %v556, 1.442695
        %v628 = vpow.pop %v627
        %v629 = vmul.f32 %v557, 1.442695
        %v630 = vpow.pop %v629
        %v631 = vmul.f32 %v558, 1.442695
        %v632 = vpow.pop %v631
        %v633 = vmul.f32 %v559, 1.442695
        %v634 = vpow.pop %v633
        %v635 = vmul.f32 %v560, 1.442695
        %v636 = vpow.pop %v635
        %v637 = vmul.f32 %v561, 1.442695
        %v638 = vpow.pop %v637
        %v639 = vmul.f32 %v562, 1.442695
        %v640 = vpow.pop %v639
        %v641 = vmul.f32 %v563, 1.442695
        %v642 = vpow.pop %v641
        %v643 = vmul.f32 %v564, 1.442695
        %v644 = vpow.pop %v643
        %v645 = vmul.f32 %v565, 1.442695
        %v646 = vpow.pop %v645
        %v647 = vmul.f32 %v566, 1.442695
        %v648 = vpow.pop %v647
        %v649 = vmul.f32 %v567, 1.442695
        %v650 = vpow.pop %v649
        %v651 = vmul.f32 %v568, 1.442695
        %v652 = vpow.pop %v651
        %v653 = vmul.f32 %v569, 1.442695
        %v654 = vpow.pop %v653
        %v655 = vmul.f32 %v570, 1.442695
        %v656 = vpow.pop %v655
        %v657 = vmul.f32 %v571, 1.442695
        %v658 = vpow.pop %v657
        %v659 = vmul.f32 %v572, 1.442695
        %v660 = vpow.pop %v659
        %v661 = vmul.f32 %v573, 1.442695
        %v662 = vpow.pop %v661
        %v663 = vmul.f32 %v574, 1.442695
        %v664 = vpow.pop %v663
        %v665 = vmul.f32 %v575, 1.442695
        %v666 = vpow.pop %v665
        %v667 = vmul.f32 %v576, 1.442695
        %v668 = vpow.pop %v667
        %v669 = vmul.f32 %v577, 1.442695
        %v670 = vpow.pop %v669
        %v671 = vmul.f32 %v578, 1.442695
        %v672 = vpow.pop %v671
        %v673 = vmul.f32 %v579, 1.442695
        %v674 = vpow.pop %v673
        %v675 = vmul.f32 %v580, 1.442695
        %v676 = vpow.pop %v675
        %v677 = vmul.f32 %v581, 1.442695
        %v678 = vpow.pop %v677
        %v679 = vmul.f32 %v582, 1.442695
        %v680 = vpow.pop %v679
        %v681 = vmul.f32 %v583, 1.442695
        %v682 = vpow.pop %v681
        %v683 = vmul.f32 %v584, 1.442695
        %v684 = vpow.pop %v683
        %v685 = vmul.f32 %v585, 1.442695
        %v686 = vpow.pop %v685
        %v687 = vmul.f32 %v586, 1.442695
        %v688 = vpow.pop %v687
        %v689 = vmul.f32 %v587, 1.442695
        %v690 = vpow.pop %v689
        %v691 = vmul.f32 %v588, 1.442695
        %v692 = vpow.pop %v691
        %v693 = vmul.f32 %v589, 1.442695
        %v694 = vpow.pop %v693
        %v695 = vmul.f32 %v590, 1.442695
        %v696 = vpow.pop %v695
        %v697 = vmul.f32 %v591, 1.442695
        %v698 = vpow.pop %v697
        %v699 = vmul.f32 %v592, 1.442695
        %v700 = vpow.pop %v699
        %v701 = vmul.f32 %v593, 1.442695
        %v702 = vpow.pop %v701
        %v703 = vmul.f32 %v594, 1.442695
        %v704 = vpow.pop %v703
        %v705 = vmul.f32 %v595, 1.442695
        %v706 = vpow.pop %v705
        %v707 = vmul.f32 %v596, 1.442695
        %v708 = vpow.pop %v707
        %v709 = vmul.f32 %v597, 1.442695
        %v710 = vpow.pop %v709
        %v711 = vmul.f32 %v598, 1.442695
        %v712 = vpow.pop %v711
        %v713 = vmul.f32 %v599, 1.442695
        %v714 = vpow.pop %v713
        %v715 = vmul.f32 %v600, 1.442695
        %v716 = vpow.pop %v715
        %v717 = vmul.f32 %v601, 1.442695
        %v718 = vpow.pop %v717
        %v719 = vmul.f32 %v602, 1.442695
        %v720 = vpow.pop %v719
        %v721 = vmul.f32 %v603, 1.442695
        %v722 = vpow.pop %v721
        %v723 = vmul.f32 %v604, 1.442695
        %v724 = vpow.pop %v723
        %v725 = vmul.f32 %v605, 1.442695
        %v726 = vpow.pop %v725
        %v727 = vmul.f32 %v606, 1.442695
        %v728 = vpow.pop %v727
        %v729 = vmul.f32 %v607, 1.442695
        %v730 = vpow.pop %v729
        %v731 = vmul.f32 %v608, 1.442695
        %v732 = vpow.pop %v731
        %v733 = vmul.f32 %v609, 1.442695
        %v734 = vpow.pop %v733
        %v735 = vmul.f32 %v610, 1.442695
        %v736 = vpow.pop %v735
        %v737 = vmul.f32 %v611, 1.442695
        %v738 = vpow.pop %v737
        %v739 = vmul.f32 %v612, 1.442695
        %v740 = vpow.pop %v739
        %v741 = vadd.f32 %v614, 1.0
        %v742 = vadd.f32 %v616, 1.0
        %v743 = vadd.f32 %v618, 1.0
        %v744 = vadd.f32 %v620, 1.0
        %v745 = vadd.f32 %v622, 1.0
        %v746 = vadd.f32 %v624, 1.0
        %v747 = vadd.f32 %v626, 1.0
        %v748 = vadd.f32 %v628, 1.0
        %v749 = vadd.f32 %v630, 1.0
        %v750 = vadd.f32 %v632, 1.0
        %v751 = vadd.f32 %v634, 1.0
        %v752 = vadd.f32 %v636, 1.0
        %v753 = vadd.f32 %v638, 1.0
        %v754 = vadd.f32 %v640, 1.0
        %v755 = vadd.f32 %v642, 1.0
        %v756 = vadd.f32 %v644, 1.0
        %v757 = vadd.f32 %v646, 1.0
        %v758 = vadd.f32 %v648, 1.0
        %v759 = vadd.f32 %v650, 1.0
        %v760 = vadd.f32 %v652, 1.0
        %v761 = vadd.f32 %v654, 1.0
        %v762 = vadd.f32 %v656, 1.0
        %v763 = vadd.f32 %v658, 1.0
        %v764 = vadd.f32 %v660, 1.0
        %v765 = vadd.f32 %v662, 1.0
        %v766 = vadd.f32 %v664, 1.0
        %v767 = vadd.f32 %v666, 1.0
        %v768 = vadd.f32 %v668, 1.0
        %v769 = vadd.f32 %v670, 1.0
        %v770 = vadd.f32 %v672, 1.0
        %v771 = vadd.f32 %v674, 1.0
        %v772 = vadd.f32 %v676, 1.0
        %v773 = vadd.f32 %v678, 1.0
        %v774 = vadd.f32 %v680, 1.0
        %v775 = vadd.f32 %v682, 1.0
        %v776 = vadd.f32 %v684, 1.0
        %v777 = vadd.f32 %v686, 1.0
        %v778 = vadd.f32 %v688, 1.0
        %v779 = vadd.f32 %v690, 1.0
        %v780 = vadd.f32 %v692, 1.0
        %v781 = vadd.f32 %v694, 1.0
        %v782 = vadd.f32 %v696, 1.0
        %v783 = vadd.f32 %v698, 1.0
        %v784 = vadd.f32 %v700, 1.0
        %v785 = vadd.f32 %v702, 1.0
        %v786 = vadd.f32 %v704, 1.0
        %v787 = vadd.f32 %v706, 1.0
        %v788 = vadd.f32 %v708, 1.0
        %v789 = vadd.f32 %v710, 1.0
        %v790 = vadd.f32 %v712, 1.0
        %v791 = vadd.f32 %v714, 1.0
        %v792 = vadd.f32 %v716, 1.0
        %v793 = vadd.f32 %v718, 1.0
        %v794 = vadd.f32 %v720, 1.0
        %v795 = vadd.f32 %v722, 1.0
        %v796 = vadd.f32 %v724, 1.0
        %v797 = vadd.f32 %v726, 1.0
        %v798 = vadd.f32 %v728, 1.0
        %v799 = vadd.f32 %v730, 1.0
        %v800 = vadd.f32 %v732, 1.0
        %v801 = vadd.f32 %v734, 1.0
        %v802 = vadd.f32 %v736, 1.0
        %v803 = vadd.f32 %v738, 1.0
        %v804 = vadd.f32 %v740, 1.0
        %v805 = vrcp.pop %v741
        %v806 = vrcp.pop %v742
        %v807 = vrcp.pop %v743
        %v808 = vrcp.pop %v744
        %v809 = vrcp.pop %v745
        %v810 = vrcp.pop %v746
        %v811 = vrcp.pop %v747
        %v812 = vrcp.pop %v748
        %v813 = vrcp.pop %v749
        %v814 = vrcp.pop %v750
        %v815 = vrcp.pop %v751
        %v816 = vrcp.pop %v752
        %v817 = vrcp.pop %v753
        %v818 = vrcp.pop %v754
        %v819 = vrcp.pop %v755
        %v820 = vrcp.pop %v756
        %v821 = vrcp.pop %v757
        %v822 = vrcp.pop %v758
        %v823 = vrcp.pop %v759
        %v824 = vrcp.pop %v760
        %v825 = vrcp.pop %v761
        %v826 = vrcp.pop %v762
        %v827 = vrcp.pop %v763
        %v828 = vrcp.pop %v764
        %v829 = vrcp.pop %v765
        %v830 = vrcp.pop %v766
        %v831 = vrcp.pop %v767
        %v832 = vrcp.pop %v768
        %v833 = vrcp.pop %v769
        %v834 = vrcp.pop %v770
        %v835 = vrcp.pop %v771
        %v836 = vrcp.pop %v772
        %v837 = vrcp.pop %v773
        %v838 = vrcp.pop %v774
        %v839 = vrcp.pop %v775
        %v840 = vrcp.pop %v776
        %v841 = vrcp.pop %v777
        %v842 = vrcp.pop %v778
        %v843 = vrcp.pop %v779
        %v844 = vrcp.pop %v780
        %v845 = vrcp.pop %v781
        %v846 = vrcp.pop %v782
        %v847 = vrcp.pop %v783
        %v848 = vrcp.pop %v784
        %v849 = vrcp.pop %v785
        %v850 = vrcp.pop %v786
        %v851 = vrcp.pop %v787
        %v852 = vrcp.pop %v788
        %v853 = vrcp.pop %v789
        %v854 = vrcp.pop %v790
        %v855 = vrcp.pop %v791
        %v856 = vrcp.pop %v792
        %v857 = vrcp.pop %v793
        %v858 = vrcp.pop %v794
        %v859 = vrcp.pop %v795
        %v860 = vrcp.pop %v796
        %v861 = vrcp.pop %v797
        %v862 = vrcp.pop %v798
        %v863 = vrcp.pop %v799
        %v864 = vrcp.pop %v800
        %v865 = vrcp.pop %v801
        %v866 = vrcp.pop %v802
        %v867 = vrcp.pop %v803
        %v868 = vrcp.pop %v804
        %869 = vst [vmem:[%s217] sm:$0xff] %v805
        %870 = vst [vmem:[%s217 + $0x8] sm:$0xff] %v806
        %871 = vst [vmem:[%s217 + $0x10] sm:$0xff] %v807
        %872 = vst [vmem:[%s217 + $0x18] sm:$0xff] %v808
        %873 = vst [vmem:[%s217 + $0x20] sm:$0xff] %v809
        %874 = vst [vmem:[%s217 + $0x28] sm:$0xff] %v810
        %875 = vst [vmem:[%s217 + $0x30] sm:$0xff] %v811
        %876 = vst [vmem:[%s217 + $0x38] sm:$0xff] %v812
        %877 = vst [vmem:[%s217 + $0x40] sm:$0xff] %v813
        %878 = vst [vmem:[%s217 + $0x48] sm:$0xff] %v814
        %879 = vst [vmem:[%s217 + $0x50] sm:$0xff] %v815
        %880 = vst [vmem:[%s217 + $0x58] sm:$0xff] %v816
        %881 = vst [vmem:[%s217 + $0x60] sm:$0xff] %v817
        %882 = vst [vmem:[%s217 + $0x68] sm:$0xff] %v818
        %883 = vst [vmem:[%s217 + $0x70] sm:$0xff] %v819
        %884 = vst [vmem:[%s217 + $0x78] sm:$0xff] %v820
        %885 = vst [vmem:[%s217 + $0x80] sm:$0xff] %v821
        %886 = vst [vmem:[%s217 + $0x88] sm:$0xff] %v822
        %887 = vst [vmem:[%s217 + $0x90] sm:$0xff] %v823
        %888 = vst [vmem:[%s217 + $0x98] sm:$0xff] %v824
        %889 = vst [vmem:[%s217 + $0xa0] sm:$0xff] %v825
        %890 = vst [vmem:[%s217 + $0xa8] sm:$0xff] %v826
        %891 = vst [vmem:[%s217 + $0xb0] sm:$0xff] %v827
        %892 = vst [vmem:[%s217 + $0xb8] sm:$0xff] %v828
        %893 = vst [vmem:[%s217 + $0xc0] sm:$0xff] %v829
        %894 = vst [vmem:[%s217 + $0xc8] sm:$0xff] %v830
        %895 = vst [vmem:[%s217 + $0xd0] sm:$0xff] %v831
        %896 = vst [vmem:[%s217 + $0xd8] sm:$0xff] %v832
        %897 = vst [vmem:[%s217 + $0xe0] sm:$0xff] %v833
        %898 = vst [vmem:[%s217 + $0xe8] sm:$0xff] %v834
        %899 = vst [vmem:[%s217 + $0xf0] sm:$0xff] %v835
        %900 = vst [vmem:[%s217 + $0xf8] sm:$0xff] %v836
        %901 = vst [vmem:[%s217 + $0x100] sm:$0xff] %v837
        %902 = vst [vmem:[%s217 + $0x108] sm:$0xff] %v838
        %903 = vst [vmem:[%s217 + $0x110] sm:$0xff] %v839
        %904 = vst [vmem:[%s217 + $0x118] sm:$0xff] %v840
        %905 = vst [vmem:[%s217 + $0x120] sm:$0xff] %v841
        %906 = vst [vmem:[%s217 + $0x128] sm:$0xff] %v842
        %907 = vst [vmem:[%s217 + $0x130] sm:$0xff] %v843
        %908 = vst [vmem:[%s217 + $0x138] sm:$0xff] %v844
        %909 = vst [vmem:[%s217 + $0x140] sm:$0xff] %v845
        %910 = vst [vmem:[%s217 + $0x148] sm:$0xff] %v846
        %911 = vst [vmem:[%s217 + $0x150] sm:$0xff] %v847
        %912 = vst [vmem:[%s217 + $0x158] sm:$0xff] %v848
        %913 = vst [vmem:[%s217 + $0x160] sm:$0xff] %v849
        %914 = vst [vmem:[%s217 + $0x168] sm:$0xff] %v850
        %915 = vst [vmem:[%s217 + $0x170] sm:$0xff] %v851
        %916 = vst [vmem:[%s217 + $0x178] sm:$0xff] %v852
        %917 = vst [vmem:[%s217 + $0x180] sm:$0xff] %v853
        %918 = vst [vmem:[%s217 + $0x188] sm:$0xff] %v854
        %919 = vst [vmem:[%s217 + $0x190] sm:$0xff] %v855
        %920 = vst [vmem:[%s217 + $0x198] sm:$0xff] %v856
        %921 = vst [vmem:[%s217 + $0x1a0] sm:$0xff] %v857
        %922 = vst [vmem:[%s217 + $0x1a8] sm:$0xff] %v858
        %923 = vst [vmem:[%s217 + $0x1b0] sm:$0xff] %v859
        %924 = vst [vmem:[%s217 + $0x1b8] sm:$0xff] %v860
        %925 = vst [vmem:[%s217 + $0x1c0] sm:$0xff] %v861
        %926 = vst [vmem:[%s217 + $0x1c8] sm:$0xff] %v862
        %927 = vst [vmem:[%s217 + $0x1d0] sm:$0xff] %v863
        %928 = vst [vmem:[%s217 + $0x1d8] sm:$0xff] %v864
        %929 = vst [vmem:[%s217 + $0x1e0] sm:$0xff] %v865
        %930 = vst [vmem:[%s217 + $0x1e8] sm:$0xff] %v866
        %931 = vst [vmem:[%s217 + $0x1f0] sm:$0xff] %v867
        %932 = vst [vmem:[%s217 + $0x1f8] sm:$0xff] %v868
        %s933 = sand.u32 %s91, 1
        %s934 = scalar_lea.sflag [#allocation4], %s933
        %s935 = sand.u32 %s91, 1
        %s936 = smul.addr %s935, 512
        %s937 = scalar_lea.vmem [#allocation7], %s936
        // Predicated region
        $region37: #{tpu_custom_call.1} parent=27 // pred_check
          %p938 = pneg %p101
        $region38: #{tpu_custom_call.1} parent=27 // pred_check_branch
          %940 = sbr.rel (%p938) target = $region40
        $region39: #{tpu_custom_call.1} parent=27 // pred_region
          %s941 = smul.u32 16, %s24
          %s942 = smul.u32 4, %s25
          %s944 = ssub.s32 8192, 8192
          %945 = vsyncadd %s934, %s944
          %s946 = smul.addr %s941, 4
          %s947 = sadd.s32 %s942, %s946
          %s948 = smul.addr %s947, 128
          %s949 = scalar_lea.hbm %s2, %s948
          %s950 = sshll.u32 %s937, 4
          %s951 = int_to_ptr.vmem [resolvable:$true] %s950
          %956 = dma.vmem_to_hbm [thread:$0]  %s951, 8192, %s949, %s934, 512, 512, 32
        $region40: #{tpu_custom_call.1} parent=27 // pred_fallthru
          _
      $region28: #{tpu_custom_call.1} parent=5 // pred_fallthru
        _
      %p957 = scmp.le.s32.totalorder 2, %s15
      // Predicated region
      $region41: #{tpu_custom_call.1} parent=5 // pred_check
        %p958 = pneg %p957
      $region42: #{tpu_custom_call.1} parent=5 // pred_check_branch
        %960 = sbr.rel (%p958) target = $region44
      $region43: #{tpu_custom_call.1} parent=5 // pred_region
        %s961 = ssub.s32 %s15, 2
        // Predicated region
        $region45: #{tpu_custom_call.1} parent=43 // pred_check
          %p962 = pneg %p107
        $region46: #{tpu_custom_call.1} parent=43 // pred_check_branch
          %964 = sbr.rel (%p962) target = $region48
        $region47: #{tpu_custom_call.1} parent=43 // pred_region
          %s965 = sand.u32 %s92, 1
          %s966 = scalar_lea.sflag [#allocation4], %s965
          %s967 = sand.u32 %s92, 1
          %s968 = smul.addr %s967, 512
          %s969 = scalar_lea.vmem [#allocation7], %s968
          %970 = dma.done %s966, 8192
        $region48: #{tpu_custom_call.1} parent=43 // pred_fallthru
          _
      $region44: #{tpu_custom_call.1} parent=5 // pred_fallthru
        _
    $region6: #{tpu_custom_call.1} parent=1 // loop_footer
      %s19 = sadd.s32 1, %s15
    $region7: #{tpu_custom_call.1} parent=1 // loop_footer_branch
      %14 = sbr.rel target = $region3
    $region8: #{tpu_custom_call.1} parent=1 // loop_exit
      _
    %971 = vsyncpa [#allocation3], 1
    %s972 = scalar_lea.sflag [#allocation3], 1
    %973 = vsyncpa %s972, 1
    %974 = vsyncpa [#allocation4], 1
    %s975 = scalar_lea.sflag [#allocation4], 1
    %976 = vsyncpa %s975, 1
    %977 = vsyncpa [#allocation5], 1
    %s978 = scalar_lea.sflag [#allocation5], 1
    %979 = vsyncpa %s978, 1

</llo_original>
